<compile_context>
chip_gen: v7x
topology: tpu7x:2x2x1
jax: 0.10.0
libtpu: 0.0.40
codegen_flags: <defaults>
</compile_context>

<pallas_src>
import functools

import jax
import jax.numpy as jnp
from jax.experimental import pallas as pl
from jax.experimental.pallas import tpu as pltpu

_EPS = 1e-12  # matches torch.nn.functional.normalize default eps


def _round_up(x, m):
    return ((x + m - 1) // m) * m


def _cdiv(a, b):
    return (a + b - 1) // b


def _next_pow2(x):
    return 1 if x <= 1 else 1 << (int(x) - 1).bit_length()


# ---------------------------------------------------------------------------
# Generation-aware VMEM budgets (v5e/v6e: 128 MiB, v7x: 64 MiB per TC)
# ---------------------------------------------------------------------------
@functools.lru_cache(maxsize=1)
def _vmem_budgets():
    """Returns (tile_budget_bytes, vmem_limit_bytes)."""
    cap = None
    try:
        info = pltpu.get_tpu_info()
        cap = getattr(info, "vmem_capacity_bytes", None)
    except Exception:
        cap = None
    if not cap or cap <= 0:
        cap = 64 * 1024 * 1024  # conservative fallback: v7x per-core VMEM
    cap = min(int(cap), 128 * 1024 * 1024)
    return int(cap * 0.70), int(cap * 0.85)


# ---------------------------------------------------------------------------
# Tile selection
# ---------------------------------------------------------------------------
_M_TILES = (1024, 512, 256, 128, 64, 32, 16, 8)
_N_TILES = (2048, 1024, 512, 256, 128)  # MXU-aligned (256-multiples preferred)


def _tile_vmem_bytes(tm, tn, dp):
    # Double-buffered bf16 feature + bf16 weight tiles, f32 output tile.
    return 2 * tm * dp * 2 + 2 * tn * dp * 2 + 2 * tm * tn * 4


def _choose_tn(cp, dp, budget):
    """Class (N) tile.  Returns the full padded CP when the whole normalized
    weight matrix can stay resident in VMEM (read from HBM exactly once)."""
    cp128 = _round_up(max(cp, 1), 128)
    if _tile_vmem_bytes(256, cp128, dp) <= budget:
        return cp128                              # resident: grid walks B only
    for tn in _N_TILES:                           # streamed: biggest tile that fits
        if tn <= cp128 and _tile_vmem_bytes(256, tn, dp) <= budget:
            return tn
    return 128


def _choose_tm(b, dp, tn, budget, resident):
    """Batch (M) tile: power-of-two bucketed (stable compiles), as large as the
    VMEM budget allows."""
    tm_cap = min(1024, max(8, _next_pow2(b)))
    if resident and tm_cap >= 512:
        tm_cap //= 2        # keep >=2 batch tiles so v7x megacore splits the grid
    for tm in _M_TILES:
        if tm <= tm_cap and _tile_vmem_bytes(tm, tn, dp) <= budget:
            return tm
    return 8


# ---------------------------------------------------------------------------
# Kernel: bf16 x bf16 MXU matmul over the shared last dim, f32 accumulation.
# Both operands are pre-normalized; D (contraction) is never tiled.
# ---------------------------------------------------------------------------
def _cosine_matmul_kernel(f_ref, wn_ref, out_ref):
    # [tm, D] . [tn, D] contracted over D -> [tm, tn]; no explicit transpose.
    out_ref[...] = jax.lax.dot_general(
        f_ref[...], wn_ref[...],
        dimension_numbers=(((1,), (1,)), ((), ())),
        preferred_element_type=jnp.float32)


@functools.partial(jax.jit, static_argnames=("tm", "tn"))
def _cosine_logits_call(features, weights_n_pad, *, tm, tn):
    b, d = features.shape
    cpp, dp = weights_n_pad.shape

    # Normalize + cast features ONCE (XLA fuses normalize+pad+cast); the Pallas
    # kernel never re-normalizes per class tile.
    f = features.astype(jnp.float32)
    inv_norm = jax.lax.rsqrt(
        jnp.maximum(jnp.sum(f * f, axis=-1, keepdims=True), _EPS * _EPS))
    f_n = (f * inv_norm).astype(jnp.bfloat16)     # == f / max(||f||, eps)

    # Batch rows bucketed to tm * 2^k (bounds distinct compiled shapes);
    # zero padding (rows and D lanes) keeps norms/dots exact.
    bp = tm * _next_pow2(_cdiv(b, tm))
    f_n = jnp.pad(f_n, ((0, bp - b), (0, dp - d)))

    grid_i, grid_j = bp // tm, cpp // tn
    # grid_j == 1 -> constant weight block index -> weights fetched once.
    weight_bytes = cpp * dp * 2 * (grid_i if grid_j > 1 else 1)
    cost = pl.CostEstimate(
        flops=2 * bp * cpp * dp,
        transcendentals=0,
        bytes_accessed=bp * dp * 2 + weight_bytes + bp * cpp * 4)

    _, vmem_limit = _vmem_budgets()

    # TODO(synk): when weights must stream on v5e, sweeping
    # pipeline_mode=pl.Buffered(3) on the weight BlockSpec may hide residual
    # DMA latency (not enabled here; untested at these shapes).
    return pl.pallas_call(
        _cosine_matmul_kernel,
        out_shape=jax.ShapeDtypeStruct((bp, cpp), jnp.float32),
        grid_spec=pltpu.PrefetchScalarGridSpec(
            num_scalar_prefetch=0,
            grid=(grid_i, grid_j),
            in_specs=[
                pl.BlockSpec((tm, dp), lambda i, j: (i, 0)),   # features (bf16)
                pl.BlockSpec((tn, dp), lambda i, j: (j, 0)),   # weights  (bf16)
            ],
            out_specs=pl.BlockSpec((tm, tn), lambda i, j: (i, j)),
        ),
        compiler_params=pltpu.CompilerParams(
            dimension_semantics=("parallel", "parallel"),
            vmem_limit_bytes=vmem_limit,
        ),
        cost_estimate=cost,
    )(f_n, weights_n_pad)


def cosine_logits_pallas(features, weights_n_padded, *, tn, valid_cp):
    """features: [B, D] f32; weights_n_padded: [CP_pad, D_pad] bf16 (rows
    L2-normalized then zero-padded).  Returns [B, valid_cp] f32 cosine sims."""
    b, d = features.shape
    cpp, dp = weights_n_padded.shape
    assert dp % 128 == 0 and cpp % tn == 0 and d <= dp, (
        features.shape, weights_n_padded.shape, tn)
    budget, _ = _vmem_budgets()
    resident = (cpp == tn)
    tm = _choose_tm(b, dp, tn, budget, resident)
    out = _cosine_logits_call(features, weights_n_padded, tm=tm, tn=tn)
    return out[:b, :valid_cp]


# ---------------------------------------------------------------------------
# Plain-JAX glue: CosineClassifier._reduce_proxies
# ---------------------------------------------------------------------------
def reduce_proxies(similarities, proxy_per_class, merging="softmax", gamma=1.0):
    if proxy_per_class == 1:
        return similarities
    bs, cp = similarities.shape
    assert cp % proxy_per_class == 0
    n_classes = cp // proxy_per_class
    simi = similarities.reshape(bs, n_classes, proxy_per_class)
    if merging == "mean":
        return simi.mean(-1)
    elif merging == "softmax":
        attn = jax.nn.softmax(gamma * simi, axis=-1)
        return (simi * attn).sum(-1)
    elif merging == "max":
        return simi.max(-1)
    elif merging == "min":
        return simi.min(-1)
    raise ValueError(f"Unknown merging: {merging}")


class CosineClassifierPallas:
    """JAX/Pallas port of inclearn CosineClassifier (distance='cosine')."""

    def __init__(self, features_dim, *, proxy_per_class=1, merging="softmax",
                 gamma=1.0, scaling=1):
        self.features_dim = features_dim
        self.proxy_per_class = proxy_per_class
        self.merging = merging
        self.gamma = gamma
        self.scaling = scaling        # unused for distance='cosine' (as in torch)
        self._weights = []            # list of [n_proxies_i, D] arrays
        self.n_classes = 0
        self._cache = None            # (raw concat weights, normalized bf16 padded, tn)
        # TODO(synk): pre_fc, negative-weights / negative_weights_bias and the
        # non-cosine distance branches of the torch module are not exercised by
        # the default config; they would be plain-JAX glue around this kernel.

    def add_classes(self, n_classes, key):
        # nn.init.kaiming_normal_(nonlinearity='linear'): N(0, 1/sqrt(fan_in))
        std = 1.0 / jnp.sqrt(jnp.float32(self.features_dim))
        w = std * jax.random.normal(
            key, (self.proxy_per_class * n_classes, self.features_dim),
            dtype=jnp.float32)
        self._weights.append(w)
        self.n_classes += n_classes
        self._cache = None            # invalidate concat / normalized cache
        return self

    def _build_cache(self):
        w = jnp.concatenate(self._weights, axis=0)            # [CP, D] f32
        cp, d = w.shape
        norm = jnp.sqrt(jnp.sum(w * w, axis=-1, keepdims=True))
        w_n = w / jnp.maximum(norm, _EPS)
        dp = _round_up(d, 128)
        budget, _ = _vmem_budgets()
        tn = _choose_tn(cp, dp, budget)
        cpp = _round_up(cp, tn)
        w_n_pad = jnp.pad(w_n, ((0, cpp - cp), (0, dp - d))).astype(jnp.bfloat16)
        self._cache = (w, w_n_pad, tn)
        return self._cache

    @property
    def weights(self):
        if self._cache is None:
            self._build_cache()
        return self._cache[0]

    def __call__(self, features):
        if self._cache is None:
            self._build_cache()
        w_raw, w_n_pad, tn = self._cache
        cp = w_raw.shape[0]

        raw_similarities = cosine_logits_pallas(
            features, w_n_pad, tn=tn, valid_cp=cp)

        if self.proxy_per_class > 1:
            similarities = reduce_proxies(
                raw_similarities, self.proxy_per_class, self.merging, self.gamma)
        else:
            similarities = raw_similarities
        return {"logits": similarities, "raw_logits": raw_similarities}


def _reference(features, weights):
    f = features / jnp.maximum(
        jnp.linalg.norm(features, axis=-1, keepdims=True), _EPS)
    w = weights / jnp.maximum(
        jnp.linalg.norm(weights, axis=-1, keepdims=True), _EPS)
    return f @ w.T


if __name__ == "__main__":
    key = jax.random.PRNGKey(0)
    k_feat, k_w1, k_w2 = jax.random.split(key, 3)

    batch, features_dim, n_classes = 8, 32, 10

    # --- proxy_per_class = 1 (default config) --------------------------------
    clf = CosineClassifierPallas(features_dim, proxy_per_class=1)
    clf.add_classes(n_classes, k_w1)

    features = jax.random.normal(k_feat, (batch, features_dim), dtype=jnp.float32)

    out = clf(features)
    logits = jax.block_until_ready(out["logits"])
    raw_logits = jax.block_until_ready(out["raw_logits"])

    ref = _reference(features, clf.weights)
    assert logits.shape == (batch, n_classes)
    assert raw_logits.shape == (batch, n_classes)
    # bf16 MXU operands with f32 accumulation: ~1e-3 error on cosine sims.
    err = float(jnp.max(jnp.abs(logits - ref)))
    assert jnp.allclose(logits, ref, atol=1e-2, rtol=1e-2), err

    # --- proxy_per_class > 1 (softmax merging glue) ---------------------------
    clf2 = CosineClassifierPallas(features_dim, proxy_per_class=2)
    clf2.add_classes(5, k_w2)
    out2 = clf2(features)
    logits2 = jax.block_until_ready(out2["logits"])
    ref2_raw = _reference(features, clf2.weights)
    ref2 = reduce_proxies(ref2_raw, 2, "softmax", 1.0)
    assert logits2.shape == (batch, 5)
    assert out2["raw_logits"].shape == (batch, 10)
    assert jnp.allclose(logits2, ref2, atol=1e-2, rtol=1e-2), \
        float(jnp.max(jnp.abs(logits2 - ref2)))

    print("KERNEL_OK")
</pallas_src>

<mosaic_0001>
module attributes {stable_mosaic.version = 11 : i64} {
  func.func @_cosine_matmul_kernel(%arg0: i32, %arg1: i32, %arg2: memref<8x128xbf16, #tpu.memory_space<vmem>>, %arg3: memref<128x128xbf16, #tpu.memory_space<vmem>>, %arg4: memref<8x128xf32, #tpu.memory_space<vmem>>) attributes {dimension_semantics = [#tpu.dimension_semantics<parallel>, #tpu.dimension_semantics<parallel>], iteration_bounds = array<i64: 1, 1>, scalar_prefetch = 0 : i64, scratch_operands = 0 : i64, tpu.core_type = #tpu.core_type<tc>, window_params = [{transform_indices = @transform_0, window_bounds = array<i64: 8, 128>}, {transform_indices = @transform_1, window_bounds = array<i64: 128, 128>}, {transform_indices = @transform_2, window_bounds = array<i64: 8, 128>}]} {
    %c0 = arith.constant 0 : index
    %c0_0 = arith.constant 0 : index
    %0 = vector.load %arg2[%c0, %c0_0] : memref<8x128xbf16, #tpu.memory_space<vmem>>, vector<8x128xbf16>
    %c0_1 = arith.constant 0 : index
    %c0_2 = arith.constant 0 : index
    %1 = vector.load %arg3[%c0_1, %c0_2] : memref<128x128xbf16, #tpu.memory_space<vmem>>, vector<128x128xbf16>
    %cst = arith.constant dense<0.000000e+00> : vector<8x128xf32>
    %2 = tpu.matmul %0, %1, %cst {dimension_numbers = #tpu.dot_dimension_numbers<[1], [1], [0], [0], [0, 0, 1, 0], [], []>} : vector<8x128xbf16>, vector<128x128xbf16>, vector<8x128xf32> -> vector<8x128xf32>
    %c0_3 = arith.constant 0 : index
    %c0_4 = arith.constant 0 : index
    %3 = vector.load %arg4[%c0_3, %c0_4] : memref<8x128xf32, #tpu.memory_space<vmem>>, vector<8x128xf32>
    tpu.vector_store %arg4[%c0_3, %c0_4], %2 {strides = array<i32>} : memref<8x128xf32, #tpu.memory_space<vmem>>, vector<8x128xf32>,
    return
  }
  func.func @transform_0(%arg0: i32, %arg1: i32) -> (i32, i32) {
    %c0_i32 = arith.constant 0 : i32
    %c0_i32_0 = arith.constant 0 : i32
    return %arg0, %c0_i32 : i32, i32
  }
  func.func @transform_1(%arg0: i32, %arg1: i32) -> (i32, i32) {
    %c0_i32 = arith.constant 0 : i32
    %c0_i32_0 = arith.constant 0 : i32
    return %arg1, %c0_i32 : i32, i32
  }
  func.func @transform_2(%arg0: i32, %arg1: i32) -> (i32, i32) {
    %c0_i32 = arith.constant 0 : i32
    return %arg0, %arg1 : i32, i32
  }
}

</mosaic_0001>

<llo_original>
// kernel: _cosine_logits_call.1
$region0: #{_cosine_logits_call.1}
  #allocation0 [shape = 'u32[]', space=smem, size = 0x4, offset = 0x4, fixed_abs, tag = 'smem constant byte address 0x4 - core index']
  #allocation1 [shape = 'u32[144,128]{1,0:T(1,128)}', space=vmem, size = 0x12000, scoped, tag = 'internal scratch']
  %s0 = inlined_call_operand.vmem [shape: bf16[8,128], index: 0, kind: input, shape index: {}]
  %s1 = inlined_call_operand.hbm [shape: bf16[128,128], index: 1, kind: input, shape index: {}]
  %s2 = inlined_call_operand.hbm [shape: f32[8,128], index: 2, kind: output, shape index: {}]
  %s3 = sld [smem:[#allocation0]]
  $region22: #{_cosine_logits_call.1} parent=0
    _
  %s5 = ssub.s32 1, %s3
  %s6 = scalar_select 0, %s5, %s3
  $region1: #{_cosine_logits_call.1} parent=0
    #allocation2 [shape = 'u8[32768]{0}', space=vmem, size = 0x8000, scoped, tag = 'input window, operand 1, single buffered']
    #allocation3 [shape = 's32[1]{0}', space=sflag, size = 0x4, scoped, tag = 'scoped memory for _cosine_logits_call.1']
    #allocation4 [shape = 's32[1]{0}', space=sflag, size = 0x4, scoped, tag = 'scoped memory for _cosine_logits_call.1']
    #allocation5 [shape = 'u8[4096]{0}', space=vmem, size = 0x1000, scoped, tag = 'output window, operand 0, single buffered']
    %7 = vsyncpa [#allocation3], 0
    %8 = vsyncpa [#allocation4], 0
    // Predicated region
    $region2: #{_cosine_logits_call.1} parent=1 // pred_check
      _
    $region3: #{_cosine_logits_call.1} parent=1 // pred_check_branch
      %10 = sbr.rel (0) target = $region5
    $region4: #{_cosine_logits_call.1} parent=1 // pred_region
      _
    $region5: #{_cosine_logits_call.1} parent=1 // pred_fallthru
      _
    // Predicated region
    $region6: #{_cosine_logits_call.1} parent=1 // pred_check
      _
    $region7: #{_cosine_logits_call.1} parent=1 // pred_check_branch
      %12 = sbr.rel (0) target = $region9
    $region8: #{_cosine_logits_call.1} parent=1 // pred_region
      %s14 = ssub.s32 1024, 1024
      %15 = vsyncadd [#allocation3], %s14
      %s16 = sshll.u32 [#allocation2], 4
      %s17 = int_to_ptr.vmem [resolvable:$true] %s16
      %22 = dma.hbm_to_vmem [thread:$0]  %s1, 1024, %s17, [#allocation3], 64, 64, 4
    $region9: #{_cosine_logits_call.1} parent=1 // pred_fallthru
      _
    // Predicated region
    $region10: #{_cosine_logits_call.1} parent=1 // pred_check
      _
    $region11: #{_cosine_logits_call.1} parent=1 // pred_check_branch
      %24 = sbr.rel (0) target = $region13
    $region12: #{_cosine_logits_call.1} parent=1 // pred_region
      %25 = dma.done [#allocation3], 1024
    $region13: #{_cosine_logits_call.1} parent=1 // pred_fallthru
      _
    %v27 = vld [vmem:[%s0] sm:$0xf]
    %v28 = vld [vmem:[#allocation2] sm:$0xf]
    %v29 = vld [vmem:[#allocation2 + $0x4] sm:$0xf]
    %v30 = vld [vmem:[#allocation2 + $0x8] sm:$0xf]
    %v31 = vld [vmem:[#allocation2 + $0xc] sm:$0xf]
    %v32 = vld [vmem:[#allocation2 + $0x10] sm:$0xf]
    %v33 = vld [vmem:[#allocation2 + $0x14] sm:$0xf]
    %v34 = vld [vmem:[#allocation2 + $0x18] sm:$0xf]
    %v35 = vld [vmem:[#allocation2 + $0x1c] sm:$0xf]
    %v36 = vld [vmem:[#allocation2 + $0x20] sm:$0xf]
    %v37 = vld [vmem:[#allocation2 + $0x24] sm:$0xf]
    %v38 = vld [vmem:[#allocation2 + $0x28] sm:$0xf]
    %v39 = vld [vmem:[#allocation2 + $0x2c] sm:$0xf]
    %v40 = vld [vmem:[#allocation2 + $0x30] sm:$0xf]
    %v41 = vld [vmem:[#allocation2 + $0x34] sm:$0xf]
    %v42 = vld [vmem:[#allocation2 + $0x38] sm:$0xf]
    %v43 = vld [vmem:[#allocation2 + $0x3c] sm:$0xf]
    %v60 = vunpack.c.l.b16 %v28
    %v61 = vunpack.c.l.b16 %v29
    %v62 = vunpack.c.l.b16 %v30
    %v63 = vunpack.c.l.b16 %v31
    %v64 = vunpack.c.l.b16 %v32
    %v65 = vunpack.c.l.b16 %v33
    %v66 = vunpack.c.l.b16 %v34
    %v67 = vunpack.c.l.b16 %v35
    %v68 = vunpack.c.l.b16 %v36
    %v69 = vunpack.c.l.b16 %v37
    %v70 = vunpack.c.l.b16 %v38
    %v71 = vunpack.c.l.b16 %v39
    %v72 = vunpack.c.l.b16 %v40
    %v73 = vunpack.c.l.b16 %v41
    %v74 = vunpack.c.l.b16 %v42
    %v75 = vunpack.c.l.b16 %v43
    %v76 = vpack.c.b16 %v61, %v60
    %v77 = vpack.c.b16 %v63, %v62
    %v78 = vpack.c.b16 %v65, %v64
    %v79 = vpack.c.b16 %v67, %v66
    %v80 = vpack.c.b16 %v69, %v68
    %v81 = vpack.c.b16 %v71, %v70
    %v82 = vpack.c.b16 %v73, %v72
    %v83 = vpack.c.b16 %v75, %v74
    %92 = vmatprep.subr.bf16.mxu0 0
    %93 = vmatpush1.bf16.xpose.msra.mxu0 %v76
    %94 = vmatprep.subr.bf16.mxu0 0
    %95 = vmatpush1.bf16.xpose.msra.mxu0 %v77
    %96 = vmatprep.subr.bf16.mxu0 0
    %97 = vmatpush1.bf16.xpose.msra.mxu0 %v78
    %98 = vmatprep.subr.bf16.mxu0 0
    %99 = vmatpush1.bf16.xpose.msra.mxu0 %v79
    %100 = vmatprep.subr.bf16.mxu0 0
    %101 = vmatpush1.bf16.xpose.msra.mxu0 %v80
    %102 = vmatprep.subr.bf16.mxu0 0
    %103 = vmatpush1.bf16.xpose.msra.mxu0 %v81
    %104 = vmatprep.subr.bf16.mxu0 0
    %105 = vmatpush1.bf16.xpose.msra.mxu0 %v82
    %106 = vmatprep.subr.bf16.mxu0 0
    %107 = vmatpush1.bf16.xpose.msra.mxu0 %v83
    %108 = vmatprep.subr.bf16.mxu0 0
    %109 = vmatpush1.bf16.xpose.msra.mxu0 0
    %110 = vmatprep.subr.bf16.mxu0 0
    %111 = vmatpush1.bf16.xpose.msra.mxu0 0
    %112 = vmatprep.subr.bf16.mxu0 0
    %113 = vmatpush1.bf16.xpose.msra.mxu0 0
    %114 = vmatprep.subr.bf16.mxu0 0
    %115 = vmatpush1.bf16.xpose.msra.mxu0 0
    %116 = vmatprep.subr.bf16.mxu0 0
    %117 = vmatpush1.bf16.xpose.msra.mxu0 0
    %118 = vmatprep.subr.bf16.mxu0 0
    %119 = vmatpush1.bf16.xpose.msra.mxu0 0
    %120 = vmatprep.subr.bf16.mxu0 0
    %121 = vmatpush1.bf16.xpose.msra.mxu0 0
    %122 = vmatprep.subr.bf16.mxu0 0
    %123 = vmatpush1.bf16.xpose.msra.mxu0 0
    %124 = vmatprep.mubr.bf16.mxu0 0
    %125 = vmatmul.mubr.bf16.gmra.mrb[0].mxu0 %v27
    %v126 = vpop.f32.mrb[0].mxu0
    %v127 = vadd.f32 0.0, %v126
    %v128 = vpop.f32.mrb[0].mxu0
    %v129 = vpop.f32.mrb[0].mxu0
    %v130 = vpop.f32.mrb[0].mxu0
    %131 = vdwg.mxu0
    %132 = vst [vmem:[#allocation5] sm:$0xff] %v127
    // Predicated region
    $region14: #{_cosine_logits_call.1} parent=1 // pred_check
      _
    $region15: #{_cosine_logits_call.1} parent=1 // pred_check_branch
      %134 = sbr.rel (0) target = $region17
    $region16: #{_cosine_logits_call.1} parent=1 // pred_region
      %s136 = ssub.s32 128, 128
      %137 = vsyncadd [#allocation4], %s136
      %s139 = sshll.u32 [#allocation5], 4
      %s140 = int_to_ptr.vmem [resolvable:$true] %s139
      %142 = dma.vmem_to_hbm [thread:$0]  %s140, 128, %s2, [#allocation4]
    $region17: #{_cosine_logits_call.1} parent=1 // pred_fallthru
      _
    // Predicated region
    $region18: #{_cosine_logits_call.1} parent=1 // pred_check
      _
    $region19: #{_cosine_logits_call.1} parent=1 // pred_check_branch
      %144 = sbr.rel (0) target = $region21
    $region20: #{_cosine_logits_call.1} parent=1 // pred_region
      %145 = dma.done [#allocation4], 128
    $region21: #{_cosine_logits_call.1} parent=1 // pred_fallthru
      _
    %146 = vsyncpa [#allocation3], 1
    %147 = vsyncpa [#allocation4], 1

</llo_original>
